<compile_context>
chip_gen: v6e
topology: v6e:2x2x1
jax: 0.10.0
libtpu: 0.0.40
codegen_flags: <defaults>
</compile_context>

<pallas_src>
import numpy as np
import jax
import jax.numpy as jnp
from jax import lax
from jax.experimental import pallas as pl
from jax.experimental.pallas import tpu as pltpu

# ---- problem sizes (small, consistent with the module) ----
B = 2            # batch
BR = 3           # branch_num
H = W = 16       # spatial
KS = 7           # conv1 kernel size
STRIDE = 2
PAD = 3
OH = (H + 2 * PAD - KS) // STRIDE + 1     # 8
OW = (W + 2 * PAD - KS) // STRIDE + 1     # 8
OHW = OH * OW                             # 64
KPAD = 64        # im2col K padded 49 -> 64 for clean tiles
C1 = 64          # conv1 out channels (resnet conv1)
FEAT = 1000      # backbone output features (resnet fc -> 1000)
NCLS = 10        # num_classes
BRK = BR * KPAD  # 192
BRC = BR * C1    # 192

# Global-average-pool matrix (compile-time constant): pool[b, r] = 1/OHW iff r//OHW == b.
_POOL_NP = np.kron(np.eye(B, dtype=np.float32),
                   np.full((1, OHW), 1.0 / OHW, dtype=np.float32))   # [B, B*OHW]


def _multibranch_kernel(patches_ref, convw_ref, pool_ref, fcw_ref, bias_ref, out_ref):
    """Fused multi-branch forward (single invocation, no grid).

    patches_ref : [B*OHW, BR*KPAD] bf16  im2col patches, branch-major lane blocks
    convw_ref   : [BR*KPAD, BR*C1] bf16  block-diagonal conv1 weights
    pool_ref    : [B, B*OHW]       bf16  global-average-pool matrix
    fcw_ref     : [BR*C1, NCLS]    bf16  branch-weighted fc @ classifier (pre-fused)
    bias_ref    : [1, NCLS]        f32   branch-weighted fc bias @ classifier + cls bias
    out_ref     : [B, NCLS]        f32
    """
    # conv1 for ALL branches: one block-diagonal bf16 MXU push, f32 accumulate, ReLU.
    conv = jnp.dot(patches_ref[...], convw_ref[...],
                   preferred_element_type=jnp.float32)              # [B*OHW, BRC]
    conv = jnp.maximum(conv, 0.0).astype(jnp.bfloat16)

    # Global average pool as a pooling-matrix matmul (rides the MXU, no XLU reductions).
    pooled = jnp.dot(pool_ref[...], conv,
                     preferred_element_type=jnp.float32)            # [B, BRC]

    # Per-branch fc + branch-weighted sum + classifier, all pre-fused into fcw/bias.
    out_ref[...] = (jnp.dot(pooled.astype(jnp.bfloat16), fcw_ref[...],
                            preferred_element_type=jnp.float32)
                    + bias_ref[...])                                 # [B, NCLS]


def _prepare_operands(x, conv_w, fc_w, fc_b, branch_w, cls_w, cls_b):
    """Layout / parameter-folding work done once per call in XLA (not in the kernel)."""
    f32 = jnp.float32

    # im2col via one patches op; output channel = branch*49 + (kh*7 + kw).
    p = lax.conv_general_dilated_patches(
        x.astype(f32), (KS, KS), (STRIDE, STRIDE),
        [(PAD, PAD), (PAD, PAD)],
        dimension_numbers=('NCHW', 'OIHW', 'NCHW'))                 # [B, BR*49, OH, OW]
    p = p.reshape(B, BR, KS * KS, OHW)
    p = jnp.pad(p, ((0, 0), (0, 0), (0, KPAD - KS * KS), (0, 0)))   # [B, BR, KPAD, OHW]
    patches = (jnp.transpose(p, (0, 3, 1, 2))
               .reshape(B * OHW, BRK).astype(jnp.bfloat16))         # [B*OHW, BR*KPAD]

    # Block-diagonal conv1 weight: [BR*KPAD, BR*C1], bf16.
    # TODO(synk): on v5e three separate [KPAD, C1] dots would cut this DMA ~3x (2/3 zeros).
    w = jnp.transpose(conv_w.reshape(BR, C1, KS * KS).astype(f32), (0, 2, 1))  # [BR,49,C1]
    w = jnp.pad(w, ((0, 0), (0, KPAD - KS * KS), (0, 0)))           # [BR, KPAD, C1]
    eye = jnp.eye(BR, dtype=f32)
    convw_bd = (jnp.einsum('bkc,br->bkrc', w, eye)
                .reshape(BRK, BRC).astype(jnp.bfloat16))

    pool = jnp.asarray(_POOL_NP, dtype=jnp.bfloat16)                # [B, B*OHW]

    # Fold branch weights + classifier into the fc weight (fold in f32, then bf16).
    bw = branch_w.reshape(BR).astype(f32)
    fcw = fc_w.astype(f32) * bw[:, None, None]                      # [BR, C1, FEAT]
    fcw_fused = (fcw.reshape(BRC, FEAT) @ cls_w.astype(f32)
                 ).astype(jnp.bfloat16)                             # [BRC, NCLS]

    # Fold branch-weighted fc biases + classifier bias into one [1, NCLS] row.
    fcb_sum = bw.reshape(1, BR) @ fc_b.astype(f32)                  # [1, FEAT]
    bias_fused = fcb_sum @ cls_w.astype(f32) + cls_b.reshape(1, NCLS).astype(f32)

    return patches, convw_bd, pool, fcw_fused, bias_fused


@jax.jit
def multibranch_sum_forward(x, conv_w, fc_w, fc_b, branch_w, cls_w, cls_b):
    """x: [B, BR, H, W]; returns logits [B, NCLS]."""
    patches, convw_bd, pool, fcw_fused, bias_fused = _prepare_operands(
        x, conv_w, fc_w, fc_b, branch_w, cls_w, cls_b)

    vmem = pl.BlockSpec(memory_space=pltpu.MemorySpace.VMEM)

    # conv 9.4 MF + pool 0.1 MF + fused fc 0.01 MF; bytes ~130 KB (bf16 weights/activations).
    cost = pl.CostEstimate(flops=9_600_000, transcendentals=0,
                           bytes_accessed=130_000)

    return pl.pallas_call(
        _multibranch_kernel,
        out_shape=jax.ShapeDtypeStruct((B, NCLS), jnp.float32),
        in_specs=[vmem] * 5,
        out_specs=vmem,
        cost_estimate=cost,
    )(patches, convw_bd, pool, fcw_fused, bias_fused)


def _reference_matched(x, conv_w, fc_w, fc_b, branch_w, cls_w, cls_b):
    """Same operand prep + same math as the kernel, in plain XLA.

    Isolates the Pallas lowering from the bf16 precision choices."""
    patches, convw_bd, pool, fcw_fused, bias_fused = _prepare_operands(
        x, conv_w, fc_w, fc_b, branch_w, cls_w, cls_b)
    conv = jnp.dot(patches, convw_bd, preferred_element_type=jnp.float32)
    conv = jnp.maximum(conv, 0.0).astype(jnp.bfloat16)
    pooled = jnp.dot(pool, conv, preferred_element_type=jnp.float32)
    return (jnp.dot(pooled.astype(jnp.bfloat16), fcw_fused,
                    preferred_element_type=jnp.float32) + bias_fused)


def _reference_f32(x, conv_w, fc_w, fc_b, branch_w, cls_w, cls_b):
    """Pure-f32 mirror of MultiBranch_sum.forward (with the stub backbone)."""
    feats = []
    for i in range(BR):
        xi = x[:, i:i + 1]                                           # [B,1,H,W]
        ci = lax.conv_general_dilated(
            xi, conv_w[i], (STRIDE, STRIDE), [(PAD, PAD), (PAD, PAD)],
            dimension_numbers=('NCHW', 'OIHW', 'NCHW'))              # [B,C1,OH,OW]
        ci = jnp.maximum(ci, 0.0)
        pooled = ci.mean(axis=(2, 3))                                # [B,C1]
        feats.append(pooled @ fc_w[i] + fc_b[i])                     # [B,FEAT]
    out = jnp.stack(feats, axis=1)                                   # [B,BR,FEAT]
    out = (out * branch_w.reshape(1, BR, 1)).sum(axis=1)             # [B,FEAT]
    return out @ cls_w + cls_b                                        # [B,NCLS]


if __name__ == "__main__":
    key = jax.random.PRNGKey(0)
    kx, k1, k2, k3, k4, k5 = jax.random.split(key, 6)

    x = jax.random.normal(kx, (B, BR, H, W), dtype=jnp.float32)

    # deterministic synthetic parameters (shapes follow the module __init__)
    conv_w = 0.10 * jax.random.normal(k1, (BR, C1, 1, KS, KS), dtype=jnp.float32)
    fc_w = 0.05 * jax.random.normal(k2, (BR, C1, FEAT), dtype=jnp.float32)
    fc_b = 0.01 * jax.random.normal(k3, (BR, FEAT), dtype=jnp.float32)
    branch_w = jnp.array([[1.0], [0.5], [1.5]], dtype=jnp.float32)   # self.weights
    cls_w = 0.02 * jax.random.normal(k4, (FEAT, NCLS), dtype=jnp.float32)
    cls_b = 0.01 * jax.random.normal(k5, (NCLS,), dtype=jnp.float32)

    out = multibranch_sum_forward(x, conv_w, fc_w, fc_b, branch_w, cls_w, cls_b)
    out = jax.block_until_ready(out)
    assert out.shape == (B, NCLS)

    # Tight check vs an XLA implementation of the identical (bf16-weight) math.
    ref_m = _reference_matched(x, conv_w, fc_w, fc_b, branch_w, cls_w, cls_b)
    assert jnp.allclose(out, ref_m, rtol=1e-3, atol=1e-3), "mismatch vs matched-precision ref"

    # Looser check vs the pure-f32 module semantics (validates all the folds).
    ref_f = _reference_f32(x, conv_w, fc_w, fc_b, branch_w, cls_w, cls_b)
    assert jnp.allclose(out, ref_f, rtol=3e-2, atol=3e-2), "mismatch vs f32 module ref"

    print("KERNEL_OK")
</pallas_src>

<mosaic_0001>
module attributes {stable_mosaic.version = 11 : i64} {
  func.func @_multibranch_kernel(%arg0: memref<128x192xbf16, #tpu.memory_space<vmem>>, %arg1: memref<192x192xbf16, #tpu.memory_space<vmem>>, %arg2: memref<2x128xbf16, #tpu.memory_space<vmem>>, %arg3: memref<192x10xbf16, #tpu.memory_space<vmem>>, %arg4: memref<1x10xf32, #tpu.memory_space<vmem>>, %arg5: memref<2x10xf32, #tpu.memory_space<vmem>>) attributes {dimension_semantics = [], scalar_prefetch = 0 : i64, scratch_operands = 0 : i64, tpu.core_type = #tpu.core_type<tc>} {
    %c0 = arith.constant 0 : index
    %c0_0 = arith.constant 0 : index
    %0 = vector.load %arg0[%c0, %c0_0] : memref<128x192xbf16, #tpu.memory_space<vmem>>, vector<128x192xbf16>
    %c0_1 = arith.constant 0 : index
    %c0_2 = arith.constant 0 : index
    %1 = vector.load %arg1[%c0_1, %c0_2] : memref<192x192xbf16, #tpu.memory_space<vmem>>, vector<192x192xbf16>
    %cst = arith.constant dense<0.000000e+00> : vector<128x192xf32>
    %2 = tpu.matmul %0, %1, %cst {dimension_numbers = #tpu.dot_dimension_numbers<[1], [0], [0], [1], [0, 0, 1, 1], [], []>} : vector<128x192xbf16>, vector<192x192xbf16>, vector<128x192xf32> -> vector<128x192xf32>
    %cst_3 = arith.constant 0.000000e+00 : f32
    %3 = vector.broadcast %cst_3 : f32 to vector<128x192xf32>
    %4 = arith.maximumf %2, %3 : vector<128x192xf32>
    %5 = arith.truncf %4 : vector<128x192xf32> to vector<128x192xbf16>
    %c0_4 = arith.constant 0 : index
    %c0_5 = arith.constant 0 : index
    %6 = vector.load %arg2[%c0_4, %c0_5] : memref<2x128xbf16, #tpu.memory_space<vmem>>, vector<2x128xbf16>
    %cst_6 = arith.constant dense<0.000000e+00> : vector<2x192xf32>
    %7 = tpu.matmul %6, %5, %cst_6 {dimension_numbers = #tpu.dot_dimension_numbers<[1], [0], [0], [1], [0, 0, 1, 1], [], []>} : vector<2x128xbf16>, vector<128x192xbf16>, vector<2x192xf32> -> vector<2x192xf32>
    %8 = arith.truncf %7 : vector<2x192xf32> to vector<2x192xbf16>
    %c0_7 = arith.constant 0 : index
    %c0_8 = arith.constant 0 : index
    %9 = vector.load %arg3[%c0_7, %c0_8] : memref<192x10xbf16, #tpu.memory_space<vmem>>, vector<192x10xbf16>
    %cst_9 = arith.constant dense<0.000000e+00> : vector<2x10xf32>
    %10 = tpu.matmul %8, %9, %cst_9 {dimension_numbers = #tpu.dot_dimension_numbers<[1], [0], [0], [1], [0, 0, 1, 1], [], []>} : vector<2x192xbf16>, vector<192x10xbf16>, vector<2x10xf32> -> vector<2x10xf32>
    %c0_10 = arith.constant 0 : index
    %c0_11 = arith.constant 0 : index
    %11 = vector.load %arg4[%c0_10, %c0_11] : memref<1x10xf32, #tpu.memory_space<vmem>>, vector<1x10xf32>
    %12 = vector.broadcast %11 : vector<1x10xf32> to vector<2x10xf32>
    %13 = arith.addf %10, %12 : vector<2x10xf32>
    %c0_12 = arith.constant 0 : index
    %c0_13 = arith.constant 0 : index
    %14 = vector.load %arg5[%c0_12, %c0_13] : memref<2x10xf32, #tpu.memory_space<vmem>>, vector<2x10xf32>
    tpu.vector_store %arg5[%c0_12, %c0_13], %13 {strides = array<i32>} : memref<2x10xf32, #tpu.memory_space<vmem>>, vector<2x10xf32>,
    return
  }
}

</mosaic_0001>

<llo_original>
// kernel: multibranch_sum_forward.1
$region0: #{multibranch_sum_forward.1}
  #allocation0 [shape = 'u32[]', space=smem, size = 0x4, offset = 0x4, fixed_abs, tag = 'smem constant byte address 0x4 - core index']
  #allocation1 [shape = 'u32[144,128]{1,0:T(1,128)}', space=vmem, size = 0x12000, scoped, tag = 'internal scratch']
  %s0 = inlined_call_operand.vmem [shape: bf16[128,192], index: 0, kind: input, shape index: {}]
  %s1 = inlined_call_operand.vmem [shape: bf16[192,192], index: 1, kind: input, shape index: {}]
  %s2 = inlined_call_operand.vmem [shape: bf16[2,128], index: 2, kind: input, shape index: {}]
  %s3 = inlined_call_operand.vmem [shape: bf16[192,10], index: 3, kind: input, shape index: {}]
  %s4 = inlined_call_operand.vmem [shape: f32[1,10], index: 4, kind: input, shape index: {}]
  %s5 = inlined_call_operand.hbm [shape: f32[2,10], index: 5, kind: output, shape index: {}]
  %s6 = sld [smem:[#allocation0]]
  $region30: #{multibranch_sum_forward.1} parent=0
    _
  %s8 = ssub.s32 1, %s6
  %s9 = scalar_select 0, %s8, %s6
  $region1: #{multibranch_sum_forward.1} parent=0
    #allocation2 [shape = 'u8[1024]{0}', space=vmem, size = 0x400, scoped, tag = 'output window, operand 0, single buffered']
    #allocation3 [shape = 's32[1]{0}', space=sflag, size = 0x4, scoped, tag = 'scoped memory for multibranch_sum_forward.1']
    %10 = vsyncpa [#allocation3], 0
    // Predicated region
    $region2: #{multibranch_sum_forward.1} parent=1 // pred_check
      _
    $region3: #{multibranch_sum_forward.1} parent=1 // pred_check_branch
      %12 = sbr.rel (0) target = $region5
    $region4: #{multibranch_sum_forward.1} parent=1 // pred_region
      _
    $region5: #{multibranch_sum_forward.1} parent=1 // pred_fallthru
      _
    // Predicated region
    $region6: #{multibranch_sum_forward.1} parent=1 // pred_check
      _
    $region7: #{multibranch_sum_forward.1} parent=1 // pred_check_branch
      %14 = sbr.rel (0) target = $region9
    $region8: #{multibranch_sum_forward.1} parent=1 // pred_region
      _
    $region9: #{multibranch_sum_forward.1} parent=1 // pred_fallthru
      _
    // Predicated region
    $region10: #{multibranch_sum_forward.1} parent=1 // pred_check
      _
    $region11: #{multibranch_sum_forward.1} parent=1 // pred_check_branch
      %16 = sbr.rel (0) target = $region13
    $region12: #{multibranch_sum_forward.1} parent=1 // pred_region
      _
    $region13: #{multibranch_sum_forward.1} parent=1 // pred_fallthru
      _
    // Predicated region
    $region14: #{multibranch_sum_forward.1} parent=1 // pred_check
      _
    $region15: #{multibranch_sum_forward.1} parent=1 // pred_check_branch
      %18 = sbr.rel (0) target = $region17
    $region16: #{multibranch_sum_forward.1} parent=1 // pred_region
      _
    $region17: #{multibranch_sum_forward.1} parent=1 // pred_fallthru
      _
    // Predicated region
    $region18: #{multibranch_sum_forward.1} parent=1 // pred_check
      _
    $region19: #{multibranch_sum_forward.1} parent=1 // pred_check_branch
      %20 = sbr.rel (0) target = $region21
    $region20: #{multibranch_sum_forward.1} parent=1 // pred_region
      _
    $region21: #{multibranch_sum_forward.1} parent=1 // pred_fallthru
      _
    %v22 = vld [vmem:[%s0] sm:$0xff]
    %v23 = vld [vmem:[%s0 + $0x8] sm:$0xff]
    %v24 = vld [vmem:[%s0 + $0x10] sm:$0xff]
    %v25 = vld [vmem:[%s0 + $0x18] sm:$0xff]
    %v26 = vld [vmem:[%s0 + $0x20] sm:$0xff]
    %v27 = vld [vmem:[%s0 + $0x28] sm:$0xff]
    %v28 = vld [vmem:[%s0 + $0x30] sm:$0xff]
    %v29 = vld [vmem:[%s0 + $0x38] sm:$0xff]
    %v30 = vld [vmem:[%s0 + $0x40] sm:$0xff]
    %v31 = vld [vmem:[%s0 + $0x48] sm:$0xff]
    %v32 = vld [vmem:[%s0 + $0x50] sm:$0xff]
    %v33 = vld [vmem:[%s0 + $0x58] sm:$0xff]
    %v34 = vld [vmem:[%s0 + $0x60] sm:$0xff]
    %v35 = vld [vmem:[%s0 + $0x68] sm:$0xff]
    %v36 = vld [vmem:[%s0 + $0x70] sm:$0xff]
    %v37 = vld [vmem:[%s0 + $0x78] sm:$0xff]
    %v38 = vld [vmem:[%s1] sm:$0xff]
    %v39 = vld [vmem:[%s1 + $0x8] sm:$0xff]
    %v40 = vld [vmem:[%s1 + $0x10] sm:$0xff]
    %v41 = vld [vmem:[%s1 + $0x18] sm:$0xff]
    %v42 = vld [vmem:[%s1 + $0x20] sm:$0xff]
    %v43 = vld [vmem:[%s1 + $0x28] sm:$0xff]
    %v44 = vld [vmem:[%s1 + $0x30] sm:$0xff]
    %v45 = vld [vmem:[%s1 + $0x38] sm:$0xff]
    %v46 = vld [vmem:[%s1 + $0x40] sm:$0xff]
    %v47 = vld [vmem:[%s1 + $0x48] sm:$0xff]
    %v48 = vld [vmem:[%s1 + $0x50] sm:$0xff]
    %v49 = vld [vmem:[%s1 + $0x58] sm:$0xff]
    %v50 = vld [vmem:[%s1 + $0x60] sm:$0xff]
    %v51 = vld [vmem:[%s1 + $0x68] sm:$0xff]
    %v52 = vld [vmem:[%s1 + $0x70] sm:$0xff]
    %v53 = vld [vmem:[%s1 + $0x78] sm:$0xff]
    %v54 = vld [vmem:[%s1 + $0x80] sm:$0xff]
    %v55 = vld [vmem:[%s1 + $0x88] sm:$0xff]
    %v56 = vld [vmem:[%s1 + $0x90] sm:$0xff]
    %v57 = vld [vmem:[%s1 + $0x98] sm:$0xff]
    %v58 = vld [vmem:[%s1 + $0xa0] sm:$0xff]
    %v59 = vld [vmem:[%s1 + $0xa8] sm:$0xff]
    %v60 = vld [vmem:[%s1 + $0xb0] sm:$0xff]
    %v61 = vld [vmem:[%s1 + $0xb8] sm:$0xff]
    %v78 = vunpack.c.l.b16 %v22
    %v79 = vunpack.c.h.b16 %v22
    %v80 = vunpack.c.l.b16 %v23
    %v81 = vunpack.c.h.b16 %v23
    %v82 = vunpack.c.l.b16 %v24
    %v83 = vunpack.c.h.b16 %v24
    %v84 = vunpack.c.l.b16 %v25
    %v85 = vunpack.c.h.b16 %v25
    %v86 = vunpack.c.l.b16 %v26
    %v87 = vunpack.c.h.b16 %v26
    %v88 = vunpack.c.l.b16 %v27
    %v89 = vunpack.c.h.b16 %v27
    %v90 = vunpack.c.l.b16 %v28
    %v91 = vunpack.c.h.b16 %v28
    %v92 = vunpack.c.l.b16 %v29
    %v93 = vunpack.c.h.b16 %v29
    %v94 = vunpack.c.l.b16 %v30
    %v95 = vunpack.c.h.b16 %v30
    %v96 = vunpack.c.l.b16 %v31
    %v97 = vunpack.c.h.b16 %v31
    %v98 = vunpack.c.l.b16 %v32
    %v99 = vunpack.c.h.b16 %v32
    %v100 = vunpack.c.l.b16 %v33
    %v101 = vunpack.c.h.b16 %v33
    %v102 = vunpack.c.l.b16 %v34
    %v103 = vunpack.c.h.b16 %v34
    %v104 = vunpack.c.l.b16 %v35
    %v105 = vunpack.c.h.b16 %v35
    %v106 = vunpack.c.l.b16 %v36
    %v107 = vunpack.c.h.b16 %v36
    %v108 = vunpack.c.l.b16 %v37
    %v109 = vunpack.c.h.b16 %v37
    %v110 = vpack.c.b16 %v80, %v78
    %v111 = vpack.c.b16 %v81, %v79
    %v112 = vpack.c.b16 %v84, %v82
    %v113 = vpack.c.b16 %v85, %v83
    %v114 = vpack.c.b16 %v88, %v86
    %v115 = vpack.c.b16 %v89, %v87
    %v116 = vpack.c.b16 %v92, %v90
    %v117 = vpack.c.b16 %v93, %v91
    %v118 = vpack.c.b16 %v96, %v94
    %v119 = vpack.c.b16 %v97, %v95
    %v120 = vpack.c.b16 %v100, %v98
    %v121 = vpack.c.b16 %v101, %v99
    %v122 = vpack.c.b16 %v104, %v102
    %v123 = vpack.c.b16 %v105, %v103
    %v124 = vpack.c.b16 %v108, %v106
    %v125 = vpack.c.b16 %v109, %v107
    %v158 = vunpack.c.l.b16 %v38
    %v159 = vunpack.c.h.b16 %v38
    %v160 = vunpack.c.l.b16 %v39
    %v161 = vunpack.c.h.b16 %v39
    %v162 = vunpack.c.l.b16 %v40
    %v163 = vunpack.c.h.b16 %v40
    %v164 = vunpack.c.l.b16 %v41
    %v165 = vunpack.c.h.b16 %v41
    %v166 = vunpack.c.l.b16 %v42
    %v167 = vunpack.c.h.b16 %v42
    %v168 = vunpack.c.l.b16 %v43
    %v169 = vunpack.c.h.b16 %v43
    %v170 = vunpack.c.l.b16 %v44
    %v171 = vunpack.c.h.b16 %v44
    %v172 = vunpack.c.l.b16 %v45
    %v173 = vunpack.c.h.b16 %v45
    %v174 = vunpack.c.l.b16 %v46
    %v175 = vunpack.c.h.b16 %v46
    %v176 = vunpack.c.l.b16 %v47
    %v177 = vunpack.c.h.b16 %v47
    %v178 = vunpack.c.l.b16 %v48
    %v179 = vunpack.c.h.b16 %v48
    %v180 = vunpack.c.l.b16 %v49
    %v181 = vunpack.c.h.b16 %v49
    %v182 = vunpack.c.l.b16 %v50
    %v183 = vunpack.c.h.b16 %v50
    %v184 = vunpack.c.l.b16 %v51
    %v185 = vunpack.c.h.b16 %v51
    %v186 = vunpack.c.l.b16 %v52
    %v187 = vunpack.c.h.b16 %v52
    %v188 = vunpack.c.l.b16 %v53
    %v189 = vunpack.c.h.b16 %v53
    %v190 = vunpack.c.l.b16 %v54
    %v191 = vunpack.c.h.b16 %v54
    %v192 = vunpack.c.l.b16 %v55
    %v193 = vunpack.c.h.b16 %v55
    %v194 = vunpack.c.l.b16 %v56
    %v195 = vunpack.c.h.b16 %v56
    %v196 = vunpack.c.l.b16 %v57
    %v197 = vunpack.c.h.b16 %v57
    %v198 = vunpack.c.l.b16 %v58
    %v199 = vunpack.c.h.b16 %v58
    %v200 = vunpack.c.l.b16 %v59
    %v201 = vunpack.c.h.b16 %v59
    %v202 = vunpack.c.l.b16 %v60
    %v203 = vunpack.c.h.b16 %v60
    %v204 = vunpack.c.l.b16 %v61
    %v205 = vunpack.c.h.b16 %v61
    %v206 = vpack.c.b16 %v160, %v158
    %v207 = vpack.c.b16 %v161, %v159
    %v208 = vpack.c.b16 %v164, %v162
    %v209 = vpack.c.b16 %v165, %v163
    %v210 = vpack.c.b16 %v168, %v166
    %v211 = vpack.c.b16 %v169, %v167
    %v212 = vpack.c.b16 %v172, %v170
    %v213 = vpack.c.b16 %v173, %v171
    %v214 = vpack.c.b16 %v176, %v174
    %v215 = vpack.c.b16 %v177, %v175
    %v216 = vpack.c.b16 %v180, %v178
    %v217 = vpack.c.b16 %v181, %v179
    %v218 = vpack.c.b16 %v184, %v182
    %v219 = vpack.c.b16 %v185, %v183
    %v220 = vpack.c.b16 %v188, %v186
    %v221 = vpack.c.b16 %v189, %v187
    %v222 = vpack.c.b16 %v192, %v190
    %v223 = vpack.c.b16 %v193, %v191
    %v224 = vpack.c.b16 %v196, %v194
    %v225 = vpack.c.b16 %v197, %v195
    %v226 = vpack.c.b16 %v200, %v198
    %v227 = vpack.c.b16 %v201, %v199
    %v228 = vpack.c.b16 %v204, %v202
    %v229 = vpack.c.b16 %v205, %v203
    %vm254 = vcmask 523264
    %v256 = vsel %vm254, %v111, 0
    %v259 = vsel %vm254, %v113, 0
    %v262 = vsel %vm254, %v115, 0
    %v265 = vsel %vm254, %v117, 0
    %v268 = vsel %vm254, %v119, 0
    %v271 = vsel %vm254, %v121, 0
    %v274 = vsel %vm254, %v123, 0
    %v277 = vsel %vm254, %v125, 0
    %279 = vmatprep.subr.bf16.mxu0 %v221
    %280 = vmatpush1.bf16.msra.mxu0 %v220
    %281 = vmatprep.subr.bf16.mxu0 %v219
    %282 = vmatpush1.bf16.msra.mxu0 %v218
    %283 = vmatprep.subr.bf16.mxu0 %v217
    %284 = vmatpush1.bf16.msra.mxu0 %v216
    %285 = vmatprep.subr.bf16.mxu0 %v215
    %286 = vmatpush1.bf16.msra.mxu0 %v214
    %287 = vmatprep.subr.bf16.mxu0 %v213
    %288 = vmatpush1.bf16.msra.mxu0 %v212
    %289 = vmatprep.subr.bf16.mxu0 %v211
    %290 = vmatpush1.bf16.msra.mxu0 %v210
    %291 = vmatprep.subr.bf16.mxu0 %v209
    %292 = vmatpush1.bf16.msra.mxu0 %v208
    %293 = vmatprep.subr.bf16.mxu0 %v207
    %294 = vmatpush1.bf16.msra.mxu0 %v206
    %295 = vmatprep.subr.bf16.mxu0 0
    %296 = vmatpush2.bf16.msra.mxu0 0
    %297 = vmatprep.subr.bf16.mxu0 0
    %298 = vmatpush2.bf16.msra.mxu0 0
    %299 = vmatprep.subr.bf16.mxu0 0
    %300 = vmatpush2.bf16.msra.mxu0 0
    %301 = vmatprep.subr.bf16.mxu0 0
    %302 = vmatpush2.bf16.msra.mxu0 0
    %303 = vmatprep.subr.bf16.mxu0 %v229
    %304 = vmatpush2.bf16.msra.mxu0 %v228
    %305 = vmatprep.subr.bf16.mxu0 %v227
    %306 = vmatpush2.bf16.msra.mxu0 %v226
    %307 = vmatprep.subr.bf16.mxu0 %v225
    %308 = vmatpush2.bf16.msra.mxu0 %v224
    %309 = vmatprep.subr.bf16.mxu0 %v223
    %310 = vmatpush2.bf16.msra.mxu0 %v222
    %311 = vmatprep.mubr.bf16.mxu0 %v256
    %312 = vmatmul.mubr.bf16.gmra.mxu0 %v110
    %v313 = vpop.f32.mrf.mxu0
    %v314 = vadd.f32 0.0, %v313
    %v315 = vpop.f32.mrf.mxu0
    %v316 = vadd.f32 0.0, %v315
    %v317 = vpop.f32.mrf.mxu0
    %v318 = vadd.f32 0.0, %v317
    %v319 = vpop.f32.mrf.mxu0
    %v320 = vadd.f32 0.0, %v319
    %321 = vmatprep.mubr.bf16.mxu0 %v259
    %322 = vmatmul.mubr.bf16.gmra.mxu0 %v112
    %v323 = vpop.f32.mrf.mxu0
    %v324 = vadd.f32 0.0, %v323
    %v325 = vpop.f32.mrf.mxu0
    %v326 = vadd.f32 0.0, %v325
    %v327 = vpop.f32.mrf.mxu0
    %v328 = vadd.f32 0.0, %v327
    %v329 = vpop.f32.mrf.mxu0
    %v330 = vadd.f32 0.0, %v329
    %331 = vmatprep.mubr.bf16.mxu0 %v262
    %332 = vmatmul.mubr.bf16.gmra.mxu0 %v114
    %v333 = vpop.f32.mrf.mxu0
    %v334 = vadd.f32 0.0, %v333
    %v335 = vpop.f32.mrf.mxu0
    %v336 = vadd.f32 0.0, %v335
    %v337 = vpop.f32.mrf.mxu0
    %v338 = vadd.f32 0.0, %v337
    %v339 = vpop.f32.mrf.mxu0
    %v340 = vadd.f32 0.0, %v339
    %341 = vmatprep.mubr.bf16.mxu0 %v265
    %342 = vmatmul.mubr.bf16.gmra.mxu0 %v116
    %v343 = vpop.f32.mrf.mxu0
    %v344 = vadd.f32 0.0, %v343
    %v345 = vpop.f32.mrf.mxu0
    %v346 = vadd.f32 0.0, %v345
    %v347 = vpop.f32.mrf.mxu0
    %v348 = vadd.f32 0.0, %v347
    %v349 = vpop.f32.mrf.mxu0
    %v350 = vadd.f32 0.0, %v349
    %351 = vmatprep.mubr.bf16.mxu0 %v268
    %352 = vmatmul.mubr.bf16.gmra.mxu0 %v118
    %v353 = vpop.f32.mrf.mxu0
    %v354 = vadd.f32 0.0, %v353
    %v355 = vpop.f32.mrf.mxu0
    %v356 = vadd.f32 0.0, %v355
    %v357 = vpop.f32.mrf.mxu0
    %v358 = vadd.f32 0.0, %v357
    %v359 = vpop.f32.mrf.mxu0
    %v360 = vadd.f32 0.0, %v359
    %361 = vmatprep.mubr.bf16.mxu0 %v271
    %362 = vmatmul.mubr.bf16.gmra.mxu0 %v120
    %v363 = vpop.f32.mrf.mxu0
    %v364 = vadd.f32 0.0, %v363
    %v365 = vpop.f32.mrf.mxu0
    %v366 = vadd.f32 0.0, %v365
    %v367 = vpop.f32.mrf.mxu0
    %v368 = vadd.f32 0.0, %v367
    %v369 = vpop.f32.mrf.mxu0
    %v370 = vadd.f32 0.0, %v369
    %371 = vmatprep.mubr.bf16.mxu0 %v274
    %372 = vmatmul.mubr.bf16.gmra.mxu0 %v122
    %v373 = vpop.f32.mrf.mxu0
    %v374 = vadd.f32 0.0, %v373
    %v375 = vpop.f32.mrf.mxu0
    %v376 = vadd.f32 0.0, %v375
    %v377 = vpop.f32.mrf.mxu0
    %v378 = vadd.f32 0.0, %v377
    %v379 = vpop.f32.mrf.mxu0
    %v380 = vadd.f32 0.0, %v379
    %381 = vmatprep.mubr.bf16.mxu0 %v277
    %382 = vmatmul.mubr.bf16.gmra.mxu0 %v124
    %v383 = vpop.f32.mrf.mxu0
    %v384 = vadd.f32 0.0, %v383
    %v385 = vpop.f32.mrf.mxu0
    %v386 = vadd.f32 0.0, %v385
    %v387 = vpop.f32.mrf.mxu0
    %v388 = vadd.f32 0.0, %v387
    %v389 = vpop.f32.mrf.mxu0
    %v390 = vadd.f32 0.0, %v389
    %391 = vdwg.mxu0
    %v392 = vmax.f32 %v314, 0.0
    %v393 = vmax.f32 %v316, 0.0
    %v394 = vmax.f32 %v318, 0.0
    %v395 = vmax.f32 %v320, 0.0
    %v396 = vmax.f32 %v324, 0.0
    %v397 = vmax.f32 %v326, 0.0
    %v398 = vmax.f32 %v328, 0.0
    %v399 = vmax.f32 %v330, 0.0
    %v400 = vmax.f32 %v334, 0.0
    %v401 = vmax.f32 %v336, 0.0
    %v402 = vmax.f32 %v338, 0.0
    %v403 = vmax.f32 %v340, 0.0
    %v404 = vmax.f32 %v344, 0.0
    %v405 = vmax.f32 %v346, 0.0
    %v406 = vmax.f32 %v348, 0.0
    %v407 = vmax.f32 %v350, 0.0
    %v408 = vmax.f32 %v354, 0.0
    %v409 = vmax.f32 %v356, 0.0
    %v410 = vmax.f32 %v358, 0.0
    %v411 = vmax.f32 %v360, 0.0
    %v412 = vmax.f32 %v364, 0.0
    %v413 = vmax.f32 %v366, 0.0
    %v414 = vmax.f32 %v368, 0.0
    %v415 = vmax.f32 %v370, 0.0
    %v416 = vmax.f32 %v374, 0.0
    %v417 = vmax.f32 %v376, 0.0
    %v418 = vmax.f32 %v378, 0.0
    %v419 = vmax.f32 %v380, 0.0
    %v420 = vmax.f32 %v384, 0.0
    %v421 = vmax.f32 %v386, 0.0
    %v422 = vmax.f32 %v388, 0.0
    %v423 = vmax.f32 %v390, 0.0
    %v424 = vpack.c.bf16 %v394, %v392
    %v425 = vpack.c.bf16 %v395, %v393
    %v426 = vpack.c.bf16 %v398, %v396
    %v427 = vpack.c.bf16 %v399, %v397
    %v428 = vpack.c.bf16 %v402, %v400
    %v429 = vpack.c.bf16 %v403, %v401
    %v430 = vpack.c.bf16 %v406, %v404
    %v431 = vpack.c.bf16 %v407, %v405
    %v432 = vpack.c.bf16 %v410, %v408
    %v433 = vpack.c.bf16 %v411, %v409
    %v434 = vpack.c.bf16 %v414, %v412
    %v435 = vpack.c.bf16 %v415, %v413
    %v436 = vpack.c.bf16 %v418, %v416
    %v437 = vpack.c.bf16 %v419, %v417
    %v438 = vpack.c.bf16 %v422, %v420
    %v439 = vpack.c.bf16 %v423, %v421
    %v440 = vld [vmem:[%s2] sm:$0x1]
    %441 = vmatprep.subr.bf16.mxu0 %v439
    %442 = vmatpush1.bf16.msra.mxu0 %v438
    %443 = vmatprep.subr.bf16.mxu0 %v437
    %444 = vmatpush1.bf16.msra.mxu0 %v436
    %445 = vmatprep.subr.bf16.mxu0 %v435
    %446 = vmatpush1.bf16.msra.mxu0 %v434
    %447 = vmatprep.subr.bf16.mxu0 %v433
    %448 = vmatpush1.bf16.msra.mxu0 %v432
    %449 = vmatprep.subr.bf16.mxu0 %v431
    %450 = vmatpush1.bf16.msra.mxu0 %v430
    %451 = vmatprep.subr.bf16.mxu0 %v429
    %452 = vmatpush1.bf16.msra.mxu0 %v428
    %453 = vmatprep.subr.bf16.mxu0 %v427
    %454 = vmatpush1.bf16.msra.mxu0 %v426
    %455 = vmatprep.subr.bf16.mxu0 %v425
    %456 = vmatpush1.bf16.msra.mxu0 %v424
    %457 = vmatprep.subr.bf16.mxu0 0
    %458 = vmatpush2.bf16.msra.mxu0 0
    %459 = vmatprep.subr.bf16.mxu0 0
    %460 = vmatpush2.bf16.msra.mxu0 0
    %461 = vmatprep.subr.bf16.mxu0 0
    %462 = vmatpush2.bf16.msra.mxu0 0
    %463 = vmatprep.subr.bf16.mxu0 0
    %464 = vmatpush2.bf16.msra.mxu0 0
    %465 = vmatprep.subr.bf16.mxu0 0
    %466 = vmatpush2.bf16.msra.mxu0 0
    %467 = vmatprep.subr.bf16.mxu0 0
    %468 = vmatpush2.bf16.msra.mxu0 0
    %469 = vmatprep.subr.bf16.mxu0 0
    %470 = vmatpush2.bf16.msra.mxu0 0
    %471 = vmatprep.subr.bf16.mxu0 0
    %472 = vmatpush2.bf16.msra.mxu0 0
    %473 = vmatprep.mubr.bf16.mxu0 0
    %474 = vmatmul.mubr.bf16.gmra.mxu0 %v440
    %v475 = vpop.f32.mrf.mxu0
    %v476 = vadd.f32 0.0, %v475
    %v477 = vpop.f32.mrf.mxu0
    %v478 = vadd.f32 0.0, %v477
    %v479 = vpop.f32.mrf.mxu0
    %v480 = vpop.f32.mrf.mxu0
    %481 = vdwg.mxu0
    %v482 = vpack.c.bf16 %v476, %v476
    %v483 = vpack.c.bf16 %v478, %v478
    %v484 = vld [vmem:[%s3] sm:$0xf]
    %v485 = vld [vmem:[%s3 + $0x4] sm:$0xf]
    %v486 = vld [vmem:[%s3 + $0x8] sm:$0xf]
    %v487 = vld [vmem:[%s3 + $0xc] sm:$0xf]
    %v488 = vld [vmem:[%s3 + $0x10] sm:$0xf]
    %v489 = vld [vmem:[%s3 + $0x14] sm:$0xf]
    %v490 = vld [vmem:[%s3 + $0x18] sm:$0xf]
    %v491 = vld [vmem:[%s3 + $0x1c] sm:$0xf]
    %v492 = vld [vmem:[%s3 + $0x20] sm:$0xf]
    %v493 = vld [vmem:[%s3 + $0x24] sm:$0xf]
    %v494 = vld [vmem:[%s3 + $0x28] sm:$0xf]
    %v495 = vld [vmem:[%s3 + $0x2c] sm:$0xf]
    %v496 = vld [vmem:[%s3 + $0x30] sm:$0xf]
    %v497 = vld [vmem:[%s3 + $0x34] sm:$0xf]
    %v498 = vld [vmem:[%s3 + $0x38] sm:$0xf]
    %v499 = vld [vmem:[%s3 + $0x3c] sm:$0xf]
    %v500 = vld [vmem:[%s3 + $0x40] sm:$0xf]
    %v501 = vld [vmem:[%s3 + $0x44] sm:$0xf]
    %v502 = vld [vmem:[%s3 + $0x48] sm:$0xf]
    %v503 = vld [vmem:[%s3 + $0x4c] sm:$0xf]
    %v504 = vld [vmem:[%s3 + $0x50] sm:$0xf]
    %v505 = vld [vmem:[%s3 + $0x54] sm:$0xf]
    %v506 = vld [vmem:[%s3 + $0x58] sm:$0xf]
    %v507 = vld [vmem:[%s3 + $0x5c] sm:$0xf]
    %v508 = vld [vmem:[%s4] sm:$0x1]
    %v510 = vlaneseq
    %v511 = vshrl.u32 %v510, 7
    %v512 = vsub.s32 0, %v511
    %v513 = vrot.slane %v508, %v512
    %v539 = vunpack.c.l.b16 %v484
    %v540 = vunpack.c.l.b16 %v485
    %v541 = vunpack.c.l.b16 %v486
    %v542 = vunpack.c.l.b16 %v487
    %v543 = vunpack.c.l.b16 %v488
    %v544 = vunpack.c.l.b16 %v489
    %v545 = vunpack.c.l.b16 %v490
    %v546 = vunpack.c.l.b16 %v491
    %v547 = vunpack.c.l.b16 %v492
    %v548 = vunpack.c.l.b16 %v493
    %v549 = vunpack.c.l.b16 %v494
    %v550 = vunpack.c.l.b16 %v495
    %v551 = vunpack.c.l.b16 %v496
    %v552 = vunpack.c.l.b16 %v497
    %v553 = vunpack.c.l.b16 %v498
    %v554 = vunpack.c.l.b16 %v499
    %v555 = vunpack.c.l.b16 %v500
    %v556 = vunpack.c.l.b16 %v501
    %v557 = vunpack.c.l.b16 %v502
    %v558 = vunpack.c.l.b16 %v503
    %v559 = vunpack.c.l.b16 %v504
    %v560 = vunpack.c.l.b16 %v505
    %v561 = vunpack.c.l.b16 %v506
    %v562 = vunpack.c.l.b16 %v507
    %v563 = vpack.c.b16 %v540, %v539
    %v564 = vpack.c.b16 %v542, %v541
    %v565 = vpack.c.b16 %v544, %v543
    %v566 = vpack.c.b16 %v546, %v545
    %v567 = vpack.c.b16 %v548, %v547
    %v568 = vpack.c.b16 %v550, %v549
    %v569 = vpack.c.b16 %v552, %v551
    %v570 = vpack.c.b16 %v554, %v553
    %v571 = vpack.c.b16 %v556, %v555
    %v572 = vpack.c.b16 %v558, %v557
    %v573 = vpack.c.b16 %v560, %v559
    %v574 = vpack.c.b16 %v562, %v561
    %v588 = vsel %vm254, %v483, 0
    %590 = vmatprep.subr.bf16.mxu0 0
    %591 = vmatpush1.bf16.msra.mxu0 %v570
    %592 = vmatprep.subr.bf16.mxu0 0
    %593 = vmatpush1.bf16.msra.mxu0 %v569
    %594 = vmatprep.subr.bf16.mxu0 0
    %595 = vmatpush1.bf16.msra.mxu0 %v568
    %596 = vmatprep.subr.bf16.mxu0 0
    %597 = vmatpush1.bf16.msra.mxu0 %v567
    %598 = vmatprep.subr.bf16.mxu0 0
    %599 = vmatpush1.bf16.msra.mxu0 %v566
    %600 = vmatprep.subr.bf16.mxu0 0
    %601 = vmatpush1.bf16.msra.mxu0 %v565
    %602 = vmatprep.subr.bf16.mxu0 0
    %603 = vmatpush1.bf16.msra.mxu0 %v564
    %604 = vmatprep.subr.bf16.mxu0 0
    %605 = vmatpush1.bf16.msra.mxu0 %v563
    %606 = vmatprep.subr.bf16.mxu0 0
    %607 = vmatpush2.bf16.msra.mxu0 0
    %608 = vmatprep.subr.bf16.mxu0 0
    %609 = vmatpush2.bf16.msra.mxu0 0
    %610 = vmatprep.subr.bf16.mxu0 0
    %611 = vmatpush2.bf16.msra.mxu0 0
    %612 = vmatprep.subr.bf16.mxu0 0
    %613 = vmatpush2.bf16.msra.mxu0 0
    %614 = vmatprep.subr.bf16.mxu0 0
    %615 = vmatpush2.bf16.msra.mxu0 %v574
    %616 = vmatprep.subr.bf16.mxu0 0
    %617 = vmatpush2.bf16.msra.mxu0 %v573
    %618 = vmatprep.subr.bf16.mxu0 0
    %619 = vmatpush2.bf16.msra.mxu0 %v572
    %620 = vmatprep.subr.bf16.mxu0 0
    %621 = vmatpush2.bf16.msra.mxu0 %v571
    %622 = vmatprep.mubr.bf16.mxu0 %v588
    %623 = vmatmul.mubr.bf16.gmra.mxu0 %v482
    %v624 = vpop.f32.mrf.mxu0
    %v625 = vadd.f32 %v513, %v624
    %v626 = vpop.f32.mrf.mxu0
    %v627 = vpop.f32.mrf.mxu0
    %v628 = vpop.f32.mrf.mxu0
    %629 = vdwg.mxu0
    %vm630 = vcmask 74752
    %631 = vst.msk [vmem:[#allocation2] sm:$0x3] %vm630, %v625
    // Predicated region
    $region22: #{multibranch_sum_forward.1} parent=1 // pred_check
      _
    $region23: #{multibranch_sum_forward.1} parent=1 // pred_check_branch
      %633 = sbr.rel (0) target = $region25
    $region24: #{multibranch_sum_forward.1} parent=1 // pred_region
      %s635 = ssub.s32 32, 32
      %636 = vsyncadd [#allocation3], %s635
      %s638 = sshll.u32 [#allocation2], 4
      %s639 = int_to_ptr.vmem [resolvable:$true] %s638
      %641 = dma.vmem_to_hbm [thread:$0]  %s639, 32, %s5, [#allocation3]
    $region25: #{multibranch_sum_forward.1} parent=1 // pred_fallthru
      _
    // Predicated region
    $region26: #{multibranch_sum_forward.1} parent=1 // pred_check
      _
    $region27: #{multibranch_sum_forward.1} parent=1 // pred_check_branch
      %643 = sbr.rel (0) target = $region29
    $region28: #{multibranch_sum_forward.1} parent=1 // pred_region
      %644 = dma.done [#allocation3], 32
    $region29: #{multibranch_sum_forward.1} parent=1 // pred_fallthru
      _
    %645 = vsyncpa [#allocation3], 1

</llo_original>
